<compile_context>
chip_gen: v7x
topology: tpu7x:2x2x1
jax: 0.10.0
libtpu: 0.0.40
codegen_flags: <defaults>
</compile_context>

<pallas_src>
import functools
import math

import jax
import jax.numpy as jnp
from jax.experimental import pallas as pl
from jax.experimental.pallas import tpu as pltpu


def _mlp_kernel(x_ref, wg_ref, bg_ref, wu_ref, bu_ref, wd_ref, bd_ref,
                o_ref, acc_ref):
    # x_ref:  (TM, H)      -- resident across the whole j (FFN) sweep
    # wg_ref: (H, TF)   bg_ref: (1, TF)
    # wu_ref: (H, TF)   bu_ref: (1, TF)
    # wd_ref: (TF, H)   bd_ref: (1, H)
    # o_ref:  (TM, H)      -- written only on the last j step
    # acc_ref:(TM, H) f32  -- VMEM accumulator for the down projection
    j = pl.program_id(1)

    @pl.when(j == 0)
    def _():
        # Fold the down-projection bias into the accumulator init.
        acc_ref[...] = jnp.broadcast_to(
            bd_ref[...].astype(jnp.float32), acc_ref.shape)

    x = x_ref[...]  # native storage dtype straight into the MXU

    gate = jnp.dot(x, wg_ref[...], preferred_element_type=jnp.float32)
    gate = gate + bg_ref[...].astype(jnp.float32)
    up = jnp.dot(x, wu_ref[...], preferred_element_type=jnp.float32)
    up = up + bu_ref[...].astype(jnp.float32)

    # h = up_linear(x) * sigmoid(gate_linear(x)); then SiLU(h) = h * sigmoid(h).
    # Activation math kept in f32 (v5e has no bf16 VPU/EUP path).
    h = up * jax.nn.sigmoid(gate)
    h = h * jax.nn.sigmoid(h)

    acc_ref[...] += jnp.dot(h.astype(wd_ref.dtype), wd_ref[...],
                            preferred_element_type=jnp.float32)

    @pl.when(j == pl.num_programs(1) - 1)
    def _():
        o_ref[...] = acc_ref[...].astype(o_ref.dtype)


def _round_up(x, m):
    return (x + m - 1) // m * m


def _pick_tile_f(F, target):
    """Largest multiple-of-128 divisor of F that is <= target (else F itself)."""
    if F <= target:
        return F
    for cand in range(target - target % 128, 127, -128):
        if F % cand == 0:
            return cand
    return F


@functools.partial(jax.jit, static_argnames=("tile_m", "tile_f"))
def mlp_pallas(x, wg, bg, wu, bu, wd, bd, *, tile_m=None, tile_f=None):
    """x: [B, S, H] -> [B, S, H]."""
    B, S, H = x.shape
    F = wg.shape[1]
    M = B * S
    x2 = x.reshape(M, H)

    if tile_m is None:
        # 256-row token tiles (matches 2x256 MXU on v6e/v7x); small problems
        # collapse to a single tile rounded to the 8-sublane granularity.
        tile_m = min(256, _round_up(M, 8))
    if tile_f is None:
        # ~1024-wide FFN tiles fit the ~48 MiB v7x working-set budget while
        # still amortizing per-step overhead on v5e/v6e.
        tile_f = _pick_tile_f(F, 1024)
    assert F % tile_f == 0

    # Ragged token count: pad to a whole number of tiles, slice afterwards.
    M_pad = _round_up(M, tile_m)
    if M_pad != M:
        x2 = jnp.pad(x2, ((0, M_pad - M), (0, 0)))

    grid = (M_pad // tile_m, F // tile_f)  # F innermost -> pipelined reduction

    x_bytes = jnp.dtype(x.dtype).itemsize
    w_bytes = jnp.dtype(wg.dtype).itemsize

    # Per-step VMEM working-set estimate (double-buffered inputs/outputs +
    # accumulator + f32 activation temporaries); used to raise the scoped
    # VMEM limit with headroom while staying safe on v7x (64 MiB physical).
    vmem_est = 2 * (
        tile_m * H * x_bytes            # x tile
        + 2 * H * tile_f * w_bytes      # W_gate, W_up
        + tile_f * H * w_bytes          # W_down
        + 2 * tile_f * w_bytes          # b_gate, b_up
        + H * w_bytes                   # b_down
        + tile_m * H * x_bytes          # output tile
    ) + tile_m * H * 4                  # f32 accumulator
    vmem_est += 3 * tile_m * tile_f * 4  # gate/up/h f32 temporaries
    vmem_limit = int(min(max(1.5 * vmem_est, 32 * 1024 * 1024),
                         48 * 1024 * 1024))

    cost = pl.CostEstimate(
        flops=6 * M * H * F,                 # 3 matmuls: 2*M*H*F each
        transcendentals=2 * M * F,           # two sigmoids per FFN element
        bytes_accessed=(M * H * x_bytes      # x
                        + M * H * x_bytes    # out
                        + (wg.size + wu.size + wd.size) * w_bytes
                        + (bg.size + bu.size + bd.size) * w_bytes),
    )

    out2 = pl.pallas_call(
        _mlp_kernel,
        out_shape=jax.ShapeDtypeStruct((M_pad, H), x.dtype),
        grid_spec=pltpu.PrefetchScalarGridSpec(
            num_scalar_prefetch=0,
            grid=grid,
            in_specs=[
                pl.BlockSpec((tile_m, H), lambda i, j: (i, 0)),   # x (j-invariant)
                pl.BlockSpec((H, tile_f), lambda i, j: (0, j)),   # W_gate
                pl.BlockSpec((1, tile_f), lambda i, j: (0, j)),   # b_gate
                pl.BlockSpec((H, tile_f), lambda i, j: (0, j)),   # W_up
                pl.BlockSpec((1, tile_f), lambda i, j: (0, j)),   # b_up
                pl.BlockSpec((tile_f, H), lambda i, j: (j, 0)),   # W_down
                pl.BlockSpec((1, H), lambda i, j: (0, 0)),        # b_down
            ],
            out_specs=pl.BlockSpec((tile_m, H), lambda i, j: (i, 0)),
            scratch_shapes=[pltpu.VMEM((tile_m, H), jnp.float32)],
        ),
        compiler_params=pltpu.CompilerParams(
            dimension_semantics=("parallel", "arbitrary"),
            vmem_limit_bytes=vmem_limit,
        ),
        cost_estimate=cost,
    )(x2, wg, bg, wu, bu, wd, bd)

    return out2[:M].reshape(B, S, H)


def init_mlp_params(key, hidden_size, dtype=jnp.float32):
    """Deterministic init matching nn.Linear's U(-1/sqrt(fan_in), 1/sqrt(fan_in))."""
    ffn = hidden_size * 4
    ks = jax.random.split(key, 6)

    def uniform(k, shape, fan_in):
        bound = 1.0 / math.sqrt(fan_in)
        return jax.random.uniform(k, shape, dtype=dtype, minval=-bound, maxval=bound)

    # stored as [in, out]  (transposed vs torch's [out, in])
    wg = uniform(ks[0], (hidden_size, ffn), hidden_size)
    bg = uniform(ks[1], (1, ffn), hidden_size)
    wu = uniform(ks[2], (hidden_size, ffn), hidden_size)
    bu = uniform(ks[3], (1, ffn), hidden_size)
    wd = uniform(ks[4], (ffn, hidden_size), ffn)
    bd = uniform(ks[5], (1, hidden_size), ffn)
    return wg, bg, wu, bu, wd, bd


def mlp_reference(x, wg, bg, wu, bu, wd, bd):
    """Plain-JAX reference with identical semantics (for a sanity check)."""
    gate = jax.nn.sigmoid(x @ wg + bg[0])
    up = x @ wu + bu[0]
    h = up * gate
    h = jax.nn.silu(h)
    return h @ wd + bd[0]


if __name__ == "__main__":
    key = jax.random.PRNGKey(0)
    k_x, k_p = jax.random.split(key)

    batch, seq, hidden = 2, 8, 32
    x = jax.random.normal(k_x, (batch, seq, hidden), dtype=jnp.float32)
    params = init_mlp_params(k_p, hidden, dtype=jnp.float32)

    # f32 storage path: exact-ish match against the reference.
    out = jax.block_until_ready(mlp_pallas(x, *params))
    ref = mlp_reference(x, *params)
    assert out.shape == (batch, seq, hidden)
    assert jnp.allclose(out, ref, atol=1e-5, rtol=1e-5), "f32 mismatch vs reference"

    # bf16 storage path: operands feed the MXU natively in bf16 (f32 accum),
    # so compare against an f32 reference with loose tolerance.
    x_bf = x.astype(jnp.bfloat16)
    params_bf = tuple(p.astype(jnp.bfloat16) for p in params)
    out_bf = jax.block_until_ready(mlp_pallas(x_bf, *params_bf))
    ref_bf = mlp_reference(x_bf.astype(jnp.float32),
                           *[p.astype(jnp.float32) for p in params_bf])
    assert jnp.allclose(out_bf.astype(jnp.float32), ref_bf,
                        atol=5e-2, rtol=5e-2), "bf16 mismatch vs reference"

    print("KERNEL_OK")
</pallas_src>

<mosaic_0001>
module attributes {stable_mosaic.version = 11 : i64} {
  func.func @_mlp_kernel(%arg0: i32, %arg1: i32, %arg2: memref<16x32xf32, #tpu.memory_space<vmem>>, %arg3: memref<32x128xf32, #tpu.memory_space<vmem>>, %arg4: memref<1x128xf32, #tpu.memory_space<vmem>>, %arg5: memref<32x128xf32, #tpu.memory_space<vmem>>, %arg6: memref<1x128xf32, #tpu.memory_space<vmem>>, %arg7: memref<128x32xf32, #tpu.memory_space<vmem>>, %arg8: memref<1x32xf32, #tpu.memory_space<vmem>>, %arg9: memref<16x32xf32, #tpu.memory_space<vmem>>, %arg10: memref<16x32xf32, #tpu.memory_space<vmem>>) attributes {dimension_semantics = [#tpu.dimension_semantics<parallel>, #tpu.dimension_semantics<arbitrary>], iteration_bounds = array<i64: 1, 1>, scalar_prefetch = 0 : i64, scratch_operands = 1 : i64, tpu.core_type = #tpu.core_type<tc>, window_params = [{transform_indices = @transform_0, window_bounds = array<i64: 16, 32>}, {transform_indices = @transform_1, window_bounds = array<i64: 32, 128>}, {transform_indices = @transform_2, window_bounds = array<i64: 1, 128>}, {transform_indices = @transform_3, window_bounds = array<i64: 32, 128>}, {transform_indices = @transform_4, window_bounds = array<i64: 1, 128>}, {transform_indices = @transform_5, window_bounds = array<i64: 128, 32>}, {pipeline_mode = #tpu.pipeline_mode<synchronous>, transform_indices = @transform_6, window_bounds = array<i64: 1, 32>}, {transform_indices = @transform_7, window_bounds = array<i64: 16, 32>}]} {
    %c0_i32 = arith.constant 0 : i32
    %0 = arith.cmpi eq, %arg1, %c0_i32 : i32
    %1 = arith.extui %0 : i1 to i32
    %c0_i32_0 = arith.constant 0 : i32
    %2 = arith.cmpi ne, %1, %c0_i32_0 : i32
    scf.if %2 {
      %c0_22 = arith.constant 0 : index
      %c0_23 = arith.constant 0 : index
      %34 = vector.load %arg8[%c0_22, %c0_23] : memref<1x32xf32, #tpu.memory_space<vmem>>, vector<1x32xf32>
      %35 = vector.shape_cast %34 : vector<1x32xf32> to vector<1x32xf32>
      %36 = vector.broadcast %35 : vector<1x32xf32> to vector<16x32xf32>
      %c0_24 = arith.constant 0 : index
      %c0_25 = arith.constant 0 : index
      %37 = vector.load %arg10[%c0_24, %c0_25] : memref<16x32xf32, #tpu.memory_space<vmem>>, vector<16x32xf32>
      tpu.vector_store %arg10[%c0_24, %c0_25], %36 {strides = array<i32>} : memref<16x32xf32, #tpu.memory_space<vmem>>, vector<16x32xf32>,
    } else {
    }
    %c0 = arith.constant 0 : index
    %c0_1 = arith.constant 0 : index
    %3 = vector.load %arg2[%c0, %c0_1] : memref<16x32xf32, #tpu.memory_space<vmem>>, vector<16x32xf32>
    %c0_2 = arith.constant 0 : index
    %c0_3 = arith.constant 0 : index
    %4 = vector.load %arg3[%c0_2, %c0_3] : memref<32x128xf32, #tpu.memory_space<vmem>>, vector<32x128xf32>
    %cst = arith.constant dense<0.000000e+00> : vector<16x128xf32>
    %5 = tpu.matmul %3, %4, %cst {dimension_numbers = #tpu.dot_dimension_numbers<[1], [0], [0], [1], [0, 0, 1, 1], [], []>} : vector<16x32xf32>, vector<32x128xf32>, vector<16x128xf32> -> vector<16x128xf32>
    %c0_4 = arith.constant 0 : index
    %c0_5 = arith.constant 0 : index
    %6 = vector.load %arg4[%c0_4, %c0_5] : memref<1x128xf32, #tpu.memory_space<vmem>>, vector<1x128xf32>
    %7 = vector.broadcast %6 : vector<1x128xf32> to vector<16x128xf32>
    %8 = arith.addf %5, %7 : vector<16x128xf32>
    %c0_6 = arith.constant 0 : index
    %c0_7 = arith.constant 0 : index
    %9 = vector.load %arg5[%c0_6, %c0_7] : memref<32x128xf32, #tpu.memory_space<vmem>>, vector<32x128xf32>
    %cst_8 = arith.constant dense<0.000000e+00> : vector<16x128xf32>
    %10 = tpu.matmul %3, %9, %cst_8 {dimension_numbers = #tpu.dot_dimension_numbers<[1], [0], [0], [1], [0, 0, 1, 1], [], []>} : vector<16x32xf32>, vector<32x128xf32>, vector<16x128xf32> -> vector<16x128xf32>
    %c0_9 = arith.constant 0 : index
    %c0_10 = arith.constant 0 : index
    %11 = vector.load %arg6[%c0_9, %c0_10] : memref<1x128xf32, #tpu.memory_space<vmem>>, vector<1x128xf32>
    %12 = vector.broadcast %11 : vector<1x128xf32> to vector<16x128xf32>
    %13 = arith.addf %10, %12 : vector<16x128xf32>
    %14 = arith.negf %8 : vector<16x128xf32>
    %15 = math.exp %14 : vector<16x128xf32>
    %cst_11 = arith.constant 1.000000e+00 : f32
    %16 = vector.broadcast %cst_11 : f32 to vector<16x128xf32>
    %17 = arith.addf %16, %15 : vector<16x128xf32>
    %18 = arith.divf %16, %17 : vector<16x128xf32>
    %19 = arith.mulf %13, %18 : vector<16x128xf32>
    %20 = arith.negf %19 : vector<16x128xf32>
    %21 = math.exp %20 : vector<16x128xf32>
    %cst_12 = arith.constant 1.000000e+00 : f32
    %22 = vector.broadcast %cst_12 : f32 to vector<16x128xf32>
    %23 = arith.addf %22, %21 : vector<16x128xf32>
    %24 = arith.divf %22, %23 : vector<16x128xf32>
    %25 = arith.mulf %19, %24 : vector<16x128xf32>
    %c0_13 = arith.constant 0 : index
    %c0_14 = arith.constant 0 : index
    %26 = vector.load %arg10[%c0_13, %c0_14] : memref<16x32xf32, #tpu.memory_space<vmem>>, vector<16x32xf32>
    %c0_15 = arith.constant 0 : index
    %c0_16 = arith.constant 0 : index
    %27 = vector.load %arg7[%c0_15, %c0_16] : memref<128x32xf32, #tpu.memory_space<vmem>>, vector<128x32xf32>
    %cst_17 = arith.constant dense<0.000000e+00> : vector<16x32xf32>
    %28 = tpu.matmul %25, %27, %cst_17 {dimension_numbers = #tpu.dot_dimension_numbers<[1], [0], [0], [1], [0, 0, 1, 1], [], []>} : vector<16x128xf32>, vector<128x32xf32>, vector<16x32xf32> -> vector<16x32xf32>
    %29 = arith.addf %26, %28 : vector<16x32xf32>
    %c0_18 = arith.constant 0 : index
    %c0_19 = arith.constant 0 : index
    %30 = vector.load %arg10[%c0_18, %c0_19] : memref<16x32xf32, #tpu.memory_space<vmem>>, vector<16x32xf32>
    tpu.vector_store %arg10[%c0_18, %c0_19], %29 {strides = array<i32>} : memref<16x32xf32, #tpu.memory_space<vmem>>, vector<16x32xf32>,
    %c0_i32_20 = arith.constant 0 : i32
    %31 = arith.cmpi eq, %arg1, %c0_i32_20 : i32
    %32 = arith.extui %31 : i1 to i32
    %c0_i32_21 = arith.constant 0 : i32
    %33 = arith.cmpi ne, %32, %c0_i32_21 : i32
    scf.if %33 {
      %c0_22 = arith.constant 0 : index
      %c0_23 = arith.constant 0 : index
      %34 = vector.load %arg10[%c0_22, %c0_23] : memref<16x32xf32, #tpu.memory_space<vmem>>, vector<16x32xf32>
      %c0_24 = arith.constant 0 : index
      %c0_25 = arith.constant 0 : index
      %35 = vector.load %arg9[%c0_24, %c0_25] : memref<16x32xf32, #tpu.memory_space<vmem>>, vector<16x32xf32>
      tpu.vector_store %arg9[%c0_24, %c0_25], %34 {strides = array<i32>} : memref<16x32xf32, #tpu.memory_space<vmem>>, vector<16x32xf32>,
    } else {
    }
    return
  }
  func.func @transform_0(%arg0: i32, %arg1: i32) -> (i32, i32) {
    %c0_i32 = arith.constant 0 : i32
    %c0_i32_0 = arith.constant 0 : i32
    return %arg0, %c0_i32 : i32, i32
  }
  func.func @transform_1(%arg0: i32, %arg1: i32) -> (i32, i32) {
    %c0_i32 = arith.constant 0 : i32
    %c0_i32_0 = arith.constant 0 : i32
    return %c0_i32, %arg1 : i32, i32
  }
  func.func @transform_2(%arg0: i32, %arg1: i32) -> (i32, i32) {
    %c0_i32 = arith.constant 0 : i32
    %c0_i32_0 = arith.constant 0 : i32
    return %c0_i32, %arg1 : i32, i32
  }
  func.func @transform_3(%arg0: i32, %arg1: i32) -> (i32, i32) {
    %c0_i32 = arith.constant 0 : i32
    %c0_i32_0 = arith.constant 0 : i32
    return %c0_i32, %arg1 : i32, i32
  }
  func.func @transform_4(%arg0: i32, %arg1: i32) -> (i32, i32) {
    %c0_i32 = arith.constant 0 : i32
    %c0_i32_0 = arith.constant 0 : i32
    return %c0_i32, %arg1 : i32, i32
  }
  func.func @transform_5(%arg0: i32, %arg1: i32) -> (i32, i32) {
    %c0_i32 = arith.constant 0 : i32
    %c0_i32_0 = arith.constant 0 : i32
    return %arg1, %c0_i32 : i32, i32
  }
  func.func @transform_6(%arg0: i32, %arg1: i32) -> (i32, i32) {
    %c0_i32 = arith.constant 0 : i32
    %c0_i32_0 = arith.constant 0 : i32
    %c0_i32_1 = arith.constant 0 : i32
    return %c0_i32, %c0_i32_0 : i32, i32
  }
  func.func @transform_7(%arg0: i32, %arg1: i32) -> (i32, i32) {
    %c0_i32 = arith.constant 0 : i32
    %c0_i32_0 = arith.constant 0 : i32
    return %arg0, %c0_i32 : i32, i32
  }
}

</mosaic_0001>

<llo_original>
// kernel: mlp_pallas.1
$region0: #{mlp_pallas.1}
  #allocation0 [shape = 'u32[]', space=smem, size = 0x4, offset = 0x4, fixed_abs, tag = 'smem constant byte address 0x4 - core index']
  #allocation1 [shape = 'u32[144,128]{1,0:T(1,128)}', space=vmem, size = 0x12000, scoped, tag = 'internal scratch']
  #allocation2 [shape = 'f32[16,32]{1,0:T(8,128)}', space=vmem, size = 0x2000, scoped, tag = 'scratch operand']
  %s0 = inlined_call_operand.vmem [shape: f32[16,32], index: 0, kind: input, shape index: {}]
  %s1 = inlined_call_operand.vmem [shape: f32[32,128], index: 1, kind: input, shape index: {}]
  %s2 = inlined_call_operand.vmem [shape: f32[1,128], index: 2, kind: input, shape index: {}]
  %s3 = inlined_call_operand.vmem [shape: f32[32,128], index: 3, kind: input, shape index: {}]
  %s4 = inlined_call_operand.vmem [shape: f32[1,128], index: 4, kind: input, shape index: {}]
  %s5 = inlined_call_operand.vmem [shape: f32[128,32], index: 5, kind: input, shape index: {}]
  %s6 = inlined_call_operand.vmem [shape: f32[1,32], index: 6, kind: input, shape index: {}]
  %s7 = inlined_call_operand.hbm [shape: f32[16,32], index: 7, kind: output, shape index: {}]
  %s8 = sld [smem:[#allocation0]]
  $region46: #{mlp_pallas.1} parent=0
    _
  %s10 = ssub.s32 1, %s8
  %s11 = scalar_select 0, %s10, %s8
  $region1: #{mlp_pallas.1} parent=0
    #allocation3 [shape = 'u8[8192]{0}', space=vmem, size = 0x2000, scoped, tag = 'output window, operand 0, single buffered']
    #allocation4 [shape = 's32[1]{0}', space=sflag, size = 0x4, scoped, tag = 'scoped memory for mlp_pallas.1']
    %12 = vsyncpa [#allocation4], 0
    // Predicated region
    $region2: #{mlp_pallas.1} parent=1 // pred_check
      _
    $region3: #{mlp_pallas.1} parent=1 // pred_check_branch
      %14 = sbr.rel (0) target = $region5
    $region4: #{mlp_pallas.1} parent=1 // pred_region
      _
    $region5: #{mlp_pallas.1} parent=1 // pred_fallthru
      _
    // Predicated region
    $region6: #{mlp_pallas.1} parent=1 // pred_check
      _
    $region7: #{mlp_pallas.1} parent=1 // pred_check_branch
      %16 = sbr.rel (0) target = $region9
    $region8: #{mlp_pallas.1} parent=1 // pred_region
      _
    $region9: #{mlp_pallas.1} parent=1 // pred_fallthru
      _
    // Predicated region
    $region10: #{mlp_pallas.1} parent=1 // pred_check
      _
    $region11: #{mlp_pallas.1} parent=1 // pred_check_branch
      %18 = sbr.rel (0) target = $region13
    $region12: #{mlp_pallas.1} parent=1 // pred_region
      _
    $region13: #{mlp_pallas.1} parent=1 // pred_fallthru
      _
    // Predicated region
    $region14: #{mlp_pallas.1} parent=1 // pred_check
      _
    $region15: #{mlp_pallas.1} parent=1 // pred_check_branch
      %20 = sbr.rel (0) target = $region17
    $region16: #{mlp_pallas.1} parent=1 // pred_region
      _
    $region17: #{mlp_pallas.1} parent=1 // pred_fallthru
      _
    // Predicated region
    $region18: #{mlp_pallas.1} parent=1 // pred_check
      _
    $region19: #{mlp_pallas.1} parent=1 // pred_check_branch
      %22 = sbr.rel (0) target = $region21
    $region20: #{mlp_pallas.1} parent=1 // pred_region
      _
    $region21: #{mlp_pallas.1} parent=1 // pred_fallthru
      _
    // Predicated region
    $region22: #{mlp_pallas.1} parent=1 // pred_check
      _
    $region23: #{mlp_pallas.1} parent=1 // pred_check_branch
      %24 = sbr.rel (0) target = $region25
    $region24: #{mlp_pallas.1} parent=1 // pred_region
      _
    $region25: #{mlp_pallas.1} parent=1 // pred_fallthru
      _
    // Predicated region
    $region26: #{mlp_pallas.1} parent=1 // pred_check
      _
    $region27: #{mlp_pallas.1} parent=1 // pred_check_branch
      %26 = sbr.rel (0) target = $region29
    $region28: #{mlp_pallas.1} parent=1 // pred_region
      _
    $region29: #{mlp_pallas.1} parent=1 // pred_fallthru
      _
    %p27 = scmp.eq.s32.totalorder 0, 0
    // Predicated region
    $region30: #{mlp_pallas.1} parent=1 // pred_check
      %p28 = pneg %p27
    $region31: #{mlp_pallas.1} parent=1 // pred_check_branch
      %30 = sbr.rel (%p28) target = $region33
    $region32: #{mlp_pallas.1} parent=1 // pred_region
      %v31 = vld [vmem:[%s6] sm:$0x1]
      %v33 = vlaneseq
      %v34 = vshrl.u32 %v33, 7
      %v35 = vsub.s32 0, %v34
      %v36 = vrot.slane %v31, %v35
      %vm38 = vcmask 261120
      %39 = vst.msk [vmem:[#allocation2] sm:$0xff] %vm38, %v36
      %40 = vst.msk [vmem:[#allocation2 + $0x8] sm:$0xff] %vm38, %v36
    $region33: #{mlp_pallas.1} parent=1 // pred_fallthru
      _
    %v41 = vld [vmem:[%s0] sm:$0xff]
    %v42 = vld [vmem:[%s0 + $0x8] sm:$0xff]
    %v43 = vld [vmem:[%s1] sm:$0xff]
    %v44 = vld [vmem:[%s1 + $0x8] sm:$0xff]
    %v45 = vld [vmem:[%s1 + $0x10] sm:$0xff]
    %v46 = vld [vmem:[%s1 + $0x18] sm:$0xff]
    %v47 = vld [vmem:[%s2] sm:$0x1]
    %v49 = vlaneseq
    %v50 = vshrl.u32 %v49, 7
    %v51 = vsub.s32 0, %v50
    %v52 = vrot.slane %v47, %v51
    %vm54 = vcmask 261120
    %v56 = vsel %vm54, %v41, 0
    %v59 = vsel %vm54, %v42, 0
    %61 = vmatprep.subr.mxu0 0.0
    %62 = vmatpush1.msra.mxu0 %v43
    %63 = vmatprep.subr.mxu0 0.0
    %64 = vmatpush1.msra.mxu0 %v44
    %65 = vmatprep.subr.mxu0 0.0
    %66 = vmatpush1.msra.mxu0 %v45
    %67 = vmatprep.subr.mxu0 0.0
    %68 = vmatpush1.msra.mxu0 %v46
    %69 = vmatprep.subr.mxu0 0.0
    %70 = vmatpush1.msra.mxu0 0.0
    %71 = vmatprep.subr.mxu0 0.0
    %72 = vmatpush1.msra.mxu0 0.0
    %73 = vmatprep.subr.mxu0 0.0
    %74 = vmatpush1.msra.mxu0 0.0
    %75 = vmatprep.subr.mxu0 0.0
    %76 = vmatpush1.msra.mxu0 0.0
    %77 = vmatprep.subr.mxu0 0.0
    %78 = vmatpush1.msra.mxu0 0.0
    %79 = vmatprep.subr.mxu0 0.0
    %80 = vmatpush1.msra.mxu0 0.0
    %81 = vmatprep.subr.mxu0 0.0
    %82 = vmatpush1.msra.mxu0 0.0
    %83 = vmatprep.subr.mxu0 0.0
    %84 = vmatpush1.msra.mxu0 0.0
    %85 = vmatprep.subr.mxu0 0.0
    %86 = vmatpush1.msra.mxu0 0.0
    %87 = vmatprep.subr.mxu0 0.0
    %88 = vmatpush1.msra.mxu0 0.0
    %89 = vmatprep.subr.mxu0 0.0
    %90 = vmatpush1.msra.mxu0 0.0
    %91 = vmatprep.subr.mxu0 0.0
    %92 = vmatpush1.msra.mxu0 0.0
    %93 = vmatprep.subr.mxu0 0.0
    %94 = vmatpush1.msra.mxu0 0.0
    %95 = vmatprep.subr.mxu0 0.0
    %96 = vmatpush1.msra.mxu0 0.0
    %97 = vmatprep.subr.mxu0 0.0
    %98 = vmatpush1.msra.mxu0 0.0
    %99 = vmatprep.subr.mxu0 0.0
    %100 = vmatpush1.msra.mxu0 0.0
    %101 = vmatprep.subr.mxu0 0.0
    %102 = vmatpush1.msra.mxu0 0.0
    %103 = vmatprep.subr.mxu0 0.0
    %104 = vmatpush1.msra.mxu0 0.0
    %105 = vmatprep.subr.mxu0 0.0
    %106 = vmatpush1.msra.mxu0 0.0
    %107 = vmatprep.subr.mxu0 0.0
    %108 = vmatpush1.msra.mxu0 0.0
    %109 = vmatprep.subr.mxu0 0.0
    %110 = vmatpush1.msra.mxu0 0.0
    %111 = vmatprep.subr.mxu0 0.0
    %112 = vmatpush1.msra.mxu0 0.0
    %113 = vmatprep.subr.mxu0 0.0
    %114 = vmatpush1.msra.mxu0 0.0
    %115 = vmatprep.subr.mxu0 0.0
    %116 = vmatpush1.msra.mxu0 0.0
    %117 = vmatprep.subr.mxu0 0.0
    %118 = vmatpush1.msra.mxu0 0.0
    %119 = vmatprep.subr.mxu0 0.0
    %120 = vmatpush1.msra.mxu0 0.0
    %121 = vmatprep.subr.mxu0 0.0
    %122 = vmatpush1.msra.mxu0 0.0
    %123 = vmatprep.subr.mxu0 0.0
    %124 = vmatpush1.msra.mxu0 0.0
    %125 = vmatprep.mubr.f32.mxu0 0.0
    %126 = vmatmul.mubr.f32.gmra.mrb[0].mxu0 %v56
    %v127 = vpop.f32.mrb[0].mxu0
    %v128 = vadd.f32 %v52, %v127
    %v129 = vpop.f32.mrb[0].mxu0
    %130 = vmatprep.mubr.f32.mxu0 0.0
    %131 = vmatmul.mubr.f32.gmra.mrb[0].mxu0 %v59
    %v132 = vpop.f32.mrb[0].mxu0
    %v133 = vadd.f32 %v52, %v132
    %v134 = vpop.f32.mrb[0].mxu0
    %135 = vdwg.mxu0
    %v136 = vld [vmem:[%s3] sm:$0xff]
    %v137 = vld [vmem:[%s3 + $0x8] sm:$0xff]
    %v138 = vld [vmem:[%s3 + $0x10] sm:$0xff]
    %v139 = vld [vmem:[%s3 + $0x18] sm:$0xff]
    %v140 = vld [vmem:[%s4] sm:$0x1]
    %v142 = vlaneseq
    %v143 = vshrl.u32 %v142, 7
    %v144 = vsub.s32 0, %v143
    %v145 = vrot.slane %v140, %v144
    %147 = vmatprep.subr.mxu0 0.0
    %148 = vmatpush1.msra.mxu0 %v136
    %149 = vmatprep.subr.mxu0 0.0
    %150 = vmatpush1.msra.mxu0 %v137
    %151 = vmatprep.subr.mxu0 0.0
    %152 = vmatpush1.msra.mxu0 %v138
    %153 = vmatprep.subr.mxu0 0.0
    %154 = vmatpush1.msra.mxu0 %v139
    %155 = vmatprep.subr.mxu0 0.0
    %156 = vmatpush1.msra.mxu0 0.0
    %157 = vmatprep.subr.mxu0 0.0
    %158 = vmatpush1.msra.mxu0 0.0
    %159 = vmatprep.subr.mxu0 0.0
    %160 = vmatpush1.msra.mxu0 0.0
    %161 = vmatprep.subr.mxu0 0.0
    %162 = vmatpush1.msra.mxu0 0.0
    %163 = vmatprep.subr.mxu0 0.0
    %164 = vmatpush1.msra.mxu0 0.0
    %165 = vmatprep.subr.mxu0 0.0
    %166 = vmatpush1.msra.mxu0 0.0
    %167 = vmatprep.subr.mxu0 0.0
    %168 = vmatpush1.msra.mxu0 0.0
    %169 = vmatprep.subr.mxu0 0.0
    %170 = vmatpush1.msra.mxu0 0.0
    %171 = vmatprep.subr.mxu0 0.0
    %172 = vmatpush1.msra.mxu0 0.0
    %173 = vmatprep.subr.mxu0 0.0
    %174 = vmatpush1.msra.mxu0 0.0
    %175 = vmatprep.subr.mxu0 0.0
    %176 = vmatpush1.msra.mxu0 0.0
    %177 = vmatprep.subr.mxu0 0.0
    %178 = vmatpush1.msra.mxu0 0.0
    %179 = vmatprep.subr.mxu0 0.0
    %180 = vmatpush1.msra.mxu0 0.0
    %181 = vmatprep.subr.mxu0 0.0
    %182 = vmatpush1.msra.mxu0 0.0
    %183 = vmatprep.subr.mxu0 0.0
    %184 = vmatpush1.msra.mxu0 0.0
    %185 = vmatprep.subr.mxu0 0.0
    %186 = vmatpush1.msra.mxu0 0.0
    %187 = vmatprep.subr.mxu0 0.0
    %188 = vmatpush1.msra.mxu0 0.0
    %189 = vmatprep.subr.mxu0 0.0
    %190 = vmatpush1.msra.mxu0 0.0
    %191 = vmatprep.subr.mxu0 0.0
    %192 = vmatpush1.msra.mxu0 0.0
    %193 = vmatprep.subr.mxu0 0.0
    %194 = vmatpush1.msra.mxu0 0.0
    %195 = vmatprep.subr.mxu0 0.0
    %196 = vmatpush1.msra.mxu0 0.0
    %197 = vmatprep.subr.mxu0 0.0
    %198 = vmatpush1.msra.mxu0 0.0
    %199 = vmatprep.subr.mxu0 0.0
    %200 = vmatpush1.msra.mxu0 0.0
    %201 = vmatprep.subr.mxu0 0.0
    %202 = vmatpush1.msra.mxu0 0.0
    %203 = vmatprep.subr.mxu0 0.0
    %204 = vmatpush1.msra.mxu0 0.0
    %205 = vmatprep.subr.mxu0 0.0
    %206 = vmatpush1.msra.mxu0 0.0
    %207 = vmatprep.subr.mxu0 0.0
    %208 = vmatpush1.msra.mxu0 0.0
    %209 = vmatprep.subr.mxu0 0.0
    %210 = vmatpush1.msra.mxu0 0.0
    %211 = vmatprep.mubr.f32.mxu0 0.0
    %212 = vmatmul.mubr.f32.gmra.mrb[0].mxu0 %v56
    %v213 = vpop.f32.mrb[0].mxu0
    %v214 = vadd.f32 %v145, %v213
    %v215 = vpop.f32.mrb[0].mxu0
    %216 = vmatprep.mubr.f32.mxu0 0.0
    %217 = vmatmul.mubr.f32.gmra.mrb[0].mxu0 %v59
    %v218 = vpop.f32.mrb[0].mxu0
    %v219 = vadd.f32 %v145, %v218
    %v220 = vpop.f32.mrb[0].mxu0
    %221 = vdwg.mxu0
    %v222 = vxor.u32 %v128, 2147483648
    %v223 = vxor.u32 %v133, 2147483648
    %v224 = vmul.f32 %v222, 1.442695
    %v225 = vpow.pop %v224
    %v226 = vmul.f32 %v223, 1.442695
    %v227 = vpow.pop %v226
    %v228 = vadd.f32 %v225, 1.0
    %v229 = vadd.f32 %v227, 1.0
    %v230 = vrcp.pop %v228
    %v231 = vmul.f32 1.0, %v230
    %v232 = vrcp.pop %v229
    %v233 = vmul.f32 1.0, %v232
    %v234 = vmul.f32 %v214, %v231
    %v235 = vmul.f32 %v219, %v233
    %v236 = vxor.u32 %v234, 2147483648
    %v237 = vxor.u32 %v235, 2147483648
    %v238 = vmul.f32 %v236, 1.442695
    %v239 = vpow.pop %v238
    %v240 = vmul.f32 %v237, 1.442695
    %v241 = vpow.pop %v240
    %v242 = vadd.f32 %v239, 1.0
    %v243 = vadd.f32 %v241, 1.0
    %v244 = vrcp.pop %v242
    %v245 = vmul.f32 1.0, %v244
    %v246 = vrcp.pop %v243
    %v247 = vmul.f32 1.0, %v246
    %v248 = vmul.f32 %v234, %v245
    %v249 = vmul.f32 %v235, %v247
    %v250 = vld [vmem:[#allocation2] sm:$0xff]
    %v251 = vld [vmem:[#allocation2 + $0x8] sm:$0xff]
    %v252 = vld [vmem:[%s5] sm:$0xff]
    %v253 = vld [vmem:[%s5 + $0x8] sm:$0xff]
    %v254 = vld [vmem:[%s5 + $0x10] sm:$0xff]
    %v255 = vld [vmem:[%s5 + $0x18] sm:$0xff]
    %v256 = vld [vmem:[%s5 + $0x20] sm:$0xff]
    %v257 = vld [vmem:[%s5 + $0x28] sm:$0xff]
    %v258 = vld [vmem:[%s5 + $0x30] sm:$0xff]
    %v259 = vld [vmem:[%s5 + $0x38] sm:$0xff]
    %v260 = vld [vmem:[%s5 + $0x40] sm:$0xff]
    %v261 = vld [vmem:[%s5 + $0x48] sm:$0xff]
    %v262 = vld [vmem:[%s5 + $0x50] sm:$0xff]
    %v263 = vld [vmem:[%s5 + $0x58] sm:$0xff]
    %v264 = vld [vmem:[%s5 + $0x60] sm:$0xff]
    %v265 = vld [vmem:[%s5 + $0x68] sm:$0xff]
    %v266 = vld [vmem:[%s5 + $0x70] sm:$0xff]
    %v267 = vld [vmem:[%s5 + $0x78] sm:$0xff]
    %268 = vmatprep.subr.mxu0 0.0
    %269 = vmatpush1.msra.mxu0 %v252
    %270 = vmatprep.subr.mxu0 0.0
    %271 = vmatpush1.msra.mxu0 %v253
    %272 = vmatprep.subr.mxu0 0.0
    %273 = vmatpush1.msra.mxu0 %v254
    %274 = vmatprep.subr.mxu0 0.0
    %275 = vmatpush1.msra.mxu0 %v255
    %276 = vmatprep.subr.mxu0 0.0
    %277 = vmatpush1.msra.mxu0 %v256
    %278 = vmatprep.subr.mxu0 0.0
    %279 = vmatpush1.msra.mxu0 %v257
    %280 = vmatprep.subr.mxu0 0.0
    %281 = vmatpush1.msra.mxu0 %v258
    %282 = vmatprep.subr.mxu0 0.0
    %283 = vmatpush1.msra.mxu0 %v259
    %284 = vmatprep.subr.mxu0 0.0
    %285 = vmatpush1.msra.mxu0 %v260
    %286 = vmatprep.subr.mxu0 0.0
    %287 = vmatpush1.msra.mxu0 %v261
    %288 = vmatprep.subr.mxu0 0.0
    %289 = vmatpush1.msra.mxu0 %v262
    %290 = vmatprep.subr.mxu0 0.0
    %291 = vmatpush1.msra.mxu0 %v263
    %292 = vmatprep.subr.mxu0 0.0
    %293 = vmatpush1.msra.mxu0 %v264
    %294 = vmatprep.subr.mxu0 0.0
    %295 = vmatpush1.msra.mxu0 %v265
    %296 = vmatprep.subr.mxu0 0.0
    %297 = vmatpush1.msra.mxu0 %v266
    %298 = vmatprep.subr.mxu0 0.0
    %299 = vmatpush1.msra.mxu0 %v267
    %300 = vmatprep.subr.mxu0 0.0
    %301 = vmatpush1.msra.mxu0 0.0
    %302 = vmatprep.subr.mxu0 0.0
    %303 = vmatpush1.msra.mxu0 0.0
    %304 = vmatprep.subr.mxu0 0.0
    %305 = vmatpush1.msra.mxu0 0.0
    %306 = vmatprep.subr.mxu0 0.0
    %307 = vmatpush1.msra.mxu0 0.0
    %308 = vmatprep.subr.mxu0 0.0
    %309 = vmatpush1.msra.mxu0 0.0
    %310 = vmatprep.subr.mxu0 0.0
    %311 = vmatpush1.msra.mxu0 0.0
    %312 = vmatprep.subr.mxu0 0.0
    %313 = vmatpush1.msra.mxu0 0.0
    %314 = vmatprep.subr.mxu0 0.0
    %315 = vmatpush1.msra.mxu0 0.0
    %316 = vmatprep.subr.mxu0 0.0
    %317 = vmatpush1.msra.mxu0 0.0
    %318 = vmatprep.subr.mxu0 0.0
    %319 = vmatpush1.msra.mxu0 0.0
    %320 = vmatprep.subr.mxu0 0.0
    %321 = vmatpush1.msra.mxu0 0.0
    %322 = vmatprep.subr.mxu0 0.0
    %323 = vmatpush1.msra.mxu0 0.0
    %324 = vmatprep.subr.mxu0 0.0
    %325 = vmatpush1.msra.mxu0 0.0
    %326 = vmatprep.subr.mxu0 0.0
    %327 = vmatpush1.msra.mxu0 0.0
    %328 = vmatprep.subr.mxu0 0.0
    %329 = vmatpush1.msra.mxu0 0.0
    %330 = vmatprep.subr.mxu0 0.0
    %331 = vmatpush1.msra.mxu0 0.0
    %332 = vmatprep.mubr.f32.mxu0 0.0
    %333 = vmatmul.mubr.f32.gmra.mrb[0].mxu0 %v248
    %v334 = vpop.f32.mrb[0].mxu0
    %v335 = vadd.f32 0.0, %v334
    %v336 = vpop.f32.mrb[0].mxu0
    %337 = vmatprep.mubr.f32.mxu0 0.0
    %338 = vmatmul.mubr.f32.gmra.mrb[0].mxu0 %v249
    %v339 = vpop.f32.mrb[0].mxu0
    %v340 = vadd.f32 0.0, %v339
    %v341 = vpop.f32.mrb[0].mxu0
    %342 = vdwg.mxu0
    %v343 = vadd.f32 %v250, %v335
    %v344 = vadd.f32 %v251, %v340
    %345 = vst.msk [vmem:[#allocation2] sm:$0xff] %vm54, %v343
    %346 = vst.msk [vmem:[#allocation2 + $0x8] sm:$0xff] %vm54, %v344
    // Predicated region
    $region34: #{mlp_pallas.1} parent=1 // pred_check
      %p347 = pneg %p27
    $region35: #{mlp_pallas.1} parent=1 // pred_check_branch
      %349 = sbr.rel (%p347) target = $region37
    $region36: #{mlp_pallas.1} parent=1 // pred_region
      %v350 = vld [vmem:[#allocation2] sm:$0xff]
      %v351 = vld [vmem:[#allocation2 + $0x8] sm:$0xff]
      %352 = vst.msk [vmem:[#allocation3] sm:$0xff] %vm54, %v350
      %353 = vst.msk [vmem:[#allocation3 + $0x8] sm:$0xff] %vm54, %v351
    $region37: #{mlp_pallas.1} parent=1 // pred_fallthru
      _
    // Predicated region
    $region38: #{mlp_pallas.1} parent=1 // pred_check
      _
    $region39: #{mlp_pallas.1} parent=1 // pred_check_branch
      %355 = sbr.rel (0) target = $region41
    $region40: #{mlp_pallas.1} parent=1 // pred_region
      %s357 = ssub.s32 256, 256
      %358 = vsyncadd [#allocation4], %s357
      %s359 = sshll.u32 [#allocation3], 4
      %s360 = int_to_ptr.vmem [resolvable:$true] %s359
      %365 = dma.vmem_to_hbm [thread:$0]  %s360, 256, %s7, [#allocation4], 128, 128, 8
    $region41: #{mlp_pallas.1} parent=1 // pred_fallthru
      _
    // Predicated region
    $region42: #{mlp_pallas.1} parent=1 // pred_check
      _
    $region43: #{mlp_pallas.1} parent=1 // pred_check_branch
      %367 = sbr.rel (0) target = $region45
    $region44: #{mlp_pallas.1} parent=1 // pred_region
      %368 = dma.done [#allocation4], 256
    $region45: #{mlp_pallas.1} parent=1 // pred_fallthru
      _
    %369 = vsyncpa [#allocation4], 1

</llo_original>
